<compile_context>
chip_gen: v7x
topology: tpu7x:2x2x1
jax: 0.10.0
libtpu: 0.0.40
codegen_flags: <defaults>
</compile_context>

<pallas_src>
import jax
import jax.numpy as jnp
from jax.experimental import pallas as pl
from jax.experimental.pallas import tpu as pltpu


def _loss_kernel(sup_ref, qry_ref, lab_ref, loss_ref, logits_ref):
    # sup_ref    : VMEM (2, eb, Ns, D)  -> [0]=mu_support,  [1]=logvar_support
    # qry_ref    : VMEM (2, eb, Nq, D)  -> [0]=mu_query,    [1]=logvar_query
    # lab_ref    : VMEM (eb, Nq, 1) int32
    # loss_ref   : VMEM (eb, 1)   per-episode scalar loss
    # logits_ref : VMEM (eb, Nq, Ns)
    _, eb, ns, _ = sup_ref.shape
    nq = qry_ref.shape[2]

    mu_s = sup_ref[0]                      # (eb, Ns, D) leading-dim view
    lv_s = sup_ref[1]
    mu_q = qry_ref[0]                      # (eb, Nq, D)
    lv_q = qry_ref[1]

    # ---- calculate_dist: logits[b,i,j] = -||mu_q[b,i] - mu_s[b,j]||^2 ------
    # Expanded as -(|q|^2 - 2 q.s + |s|^2); the q.s contraction is a batched
    # MXU dot_general.  (Slightly less numerically stable than the direct
    # (q-s)^2 form; fine for unit-scale latents at rtol=1e-3.)
    qn = jnp.sum(mu_q * mu_q, axis=2, keepdims=True)           # (eb, Nq, 1)
    sn = jnp.sum(mu_s * mu_s, axis=2)[:, None, :]               # (eb, 1, Ns)
    qs = jnp.einsum('bqd,bkd->bqk', mu_q, mu_s,
                    preferred_element_type=jnp.float32)         # (eb, Nq, Ns)
    logits = 2.0 * qs - qn - sn
    logits_ref[...] = logits

    # ---- cross entropy (mean reduction, F.cross_entropy default) -----------
    m = jnp.max(logits, axis=2, keepdims=True)                              # (eb, Nq, 1)
    lse = m + jnp.log(jnp.sum(jnp.exp(logits - m), axis=2, keepdims=True))  # (eb, Nq, 1)
    col = jax.lax.broadcasted_iota(jnp.int32, (eb, nq, ns), 2)
    onehot = (col == lab_ref[...]).astype(jnp.float32)                      # (eb, Nq, Ns)
    picked = jnp.sum(logits * onehot, axis=2, keepdims=True)                # (eb, Nq, 1)
    ce = jnp.sum(lse - picked, axis=1) * (1.0 / nq)                         # (eb, 1)

    # ---- KL divergence ------------------------------------------------------
    def _kld_term(mu, lv):
        t = 1.0 + lv - mu * mu - jnp.exp(lv)
        return jnp.sum(jnp.sum(t, axis=2, keepdims=True), axis=1)           # (eb, 1)

    kld = -0.5 * (_kld_term(mu_s, lv_s) * (1.0 / ns)
                  + _kld_term(mu_q, lv_q) * (1.0 / nq))                     # (eb, 1)

    loss_ref[...] = 0.1 * kld + ce


def loss_forward_batched(mu_support, logvar_support, mu_query, logvar_query, labels):
    """B independent episodes in a single pallas_call.

    Shapes: mu/logvar_support (B, Ns, D), mu/logvar_query (B, Nq, D),
            labels (B, Nq) int.  Returns (loss (B,), logits (B, Nq, Ns)).
    """
    B, Ns, D = mu_support.shape
    _, Nq, _ = mu_query.shape

    # Episodes per grid step.  Policy keeps the loss-output block legal:
    # either eb == B_pad (full extent) or eb is a multiple of 8.
    eb = B if B <= 16 else 16
    B_pad = -(-B // eb) * eb
    pad = B_pad - B

    f32 = jnp.float32
    mu_s = mu_support.astype(f32)
    lv_s = logvar_support.astype(f32)
    mu_q = mu_query.astype(f32)
    lv_q = logvar_query.astype(f32)
    lab = jnp.asarray(labels, jnp.int32).reshape(B, Nq)
    if pad:
        _zp = lambda a: jnp.pad(a, ((0, pad), (0, 0), (0, 0)))
        mu_s, lv_s, mu_q, lv_q = _zp(mu_s), _zp(lv_s), _zp(mu_q), _zp(lv_q)
        lab = jnp.pad(lab, ((0, pad), (0, 0)))

    sup = jnp.stack([mu_s, lv_s], axis=0)      # (2, B_pad, Ns, D)
    qry = jnp.stack([mu_q, lv_q], axis=0)      # (2, B_pad, Nq, D)
    lab = lab[:, :, None]                      # (B_pad, Nq, 1)

    grid_spec = pltpu.PrefetchScalarGridSpec(
        num_scalar_prefetch=0,
        grid=(B_pad // eb,),
        in_specs=[
            pl.BlockSpec((2, eb, Ns, D), lambda i: (0, i, 0, 0)),
            pl.BlockSpec((2, eb, Nq, D), lambda i: (0, i, 0, 0)),
            pl.BlockSpec((eb, Nq, 1), lambda i: (i, 0, 0)),
        ],
        out_specs=(
            pl.BlockSpec((eb, 1), lambda i: (i, 0)),
            pl.BlockSpec((eb, Nq, Ns), lambda i: (i, 0, 0)),
        ),
    )
    loss, logits = pl.pallas_call(
        _loss_kernel,
        grid_spec=grid_spec,
        out_shape=(jax.ShapeDtypeStruct((B_pad, 1), jnp.float32),
                   jax.ShapeDtypeStruct((B_pad, Nq, Ns), jnp.float32)),
        compiler_params=pltpu.CompilerParams(
            dimension_semantics=("parallel",)),   # v7x: split episode blocks over TCs
    )(sup, qry, lab)
    return loss[:B, 0], logits[:B]


def loss_forward(embedding_support, recon_support, mu_support, logvar_support,
                 x_support, embedding_query, recon_query, mu_query, logvar_query,
                 x_query, labels):
    """Single-episode forward matching PyTorch Loss.forward.

    Returns (0.1 * KLD + CE, logits).  The embedding/recon/x tensors only feed
    the MSE term, which the reference module computes but never returns, so
    they are dropped here (no HBM->VMEM traffic for dead inputs).
    """
    del embedding_support, recon_support, x_support
    del embedding_query, recon_query, x_query
    loss, logits = loss_forward_batched(
        mu_support[None], logvar_support[None],
        mu_query[None], logvar_query[None],
        jnp.asarray(labels, jnp.int32)[None])
    return loss[0], logits[0]


def _reference(mu_s, lv_s, mu_q, lv_q, labels):
    # pure-JAX reference for verification
    logits = -jnp.sum((mu_q[:, None, :] - mu_s[None, :, :]) ** 2, axis=2)
    lse = jax.nn.logsumexp(logits, axis=1)
    ce = jnp.mean(lse - logits[jnp.arange(logits.shape[0]), labels])
    kld_s = -0.5 * jnp.sum(1.0 + lv_s - mu_s ** 2 - jnp.exp(lv_s))
    kld_q = -0.5 * jnp.sum(1.0 + lv_q - mu_q ** 2 - jnp.exp(lv_q))
    kld = kld_s / mu_s.shape[0] + kld_q / mu_q.shape[0]
    return 0.1 * kld + ce, logits


if __name__ == "__main__":
    key = jax.random.PRNGKey(0)
    Ns, Nq, D, E = 8, 8, 32, 64  # support size, query size, latent dim, embedding dim
    ks = jax.random.split(key, 11)

    embedding_support = jax.random.normal(ks[0], (Ns, E), jnp.float32)
    recon_support     = jax.random.normal(ks[1], (Ns, E), jnp.float32)
    mu_support        = jax.random.normal(ks[2], (Ns, D), jnp.float32)
    logvar_support    = 0.1 * jax.random.normal(ks[3], (Ns, D), jnp.float32)
    x_support         = jax.random.normal(ks[4], (Ns, 1, 28, 28), jnp.float32)
    embedding_query   = jax.random.normal(ks[5], (Nq, E), jnp.float32)
    recon_query       = jax.random.normal(ks[6], (Nq, E), jnp.float32)
    mu_query          = jax.random.normal(ks[7], (Nq, D), jnp.float32)
    logvar_query      = 0.1 * jax.random.normal(ks[8], (Nq, D), jnp.float32)
    x_query           = jax.random.normal(ks[9], (Nq, 1, 28, 28), jnp.float32)
    labels            = jax.random.randint(ks[10], (Nq,), 0, Ns, jnp.int32)

    # ---- single-episode path (matches the PyTorch module signature) --------
    loss, logits = loss_forward(embedding_support, recon_support, mu_support,
                                logvar_support, x_support, embedding_query,
                                recon_query, mu_query, logvar_query, x_query,
                                labels)
    jax.block_until_ready((loss, logits))

    ref_loss, ref_logits = _reference(mu_support, logvar_support,
                                      mu_query, logvar_query, labels)
    assert jnp.allclose(loss, ref_loss, rtol=1e-3, atol=1e-3)
    assert jnp.allclose(logits, ref_logits, rtol=1e-3, atol=1e-3)

    # ---- batched path: B independent episodes in one launch ----------------
    for B in (4, 20):  # 4: single grid step; 20: multi-step grid + padding path
        kb = jax.random.split(jax.random.PRNGKey(B), 5)
        mu_s_b = jax.random.normal(kb[0], (B, Ns, D), jnp.float32)
        lv_s_b = 0.1 * jax.random.normal(kb[1], (B, Ns, D), jnp.float32)
        mu_q_b = jax.random.normal(kb[2], (B, Nq, D), jnp.float32)
        lv_q_b = 0.1 * jax.random.normal(kb[3], (B, Nq, D), jnp.float32)
        labels_b = jax.random.randint(kb[4], (B, Nq), 0, Ns, jnp.int32)

        loss_b, logits_b = loss_forward_batched(mu_s_b, lv_s_b, mu_q_b, lv_q_b, labels_b)
        jax.block_until_ready((loss_b, logits_b))
        for e in range(B):
            rl, rg = _reference(mu_s_b[e], lv_s_b[e], mu_q_b[e], lv_q_b[e], labels_b[e])
            assert jnp.allclose(loss_b[e], rl, rtol=1e-3, atol=1e-3)
            assert jnp.allclose(logits_b[e], rg, rtol=1e-3, atol=1e-3)

    print("KERNEL_OK")
</pallas_src>

<mosaic_0001>
module attributes {stable_mosaic.version = 11 : i64} {
  func.func @_loss_kernel(%arg0: i32, %arg1: memref<2x1x8x32xf32, #tpu.memory_space<vmem>>, %arg2: memref<2x1x8x32xf32, #tpu.memory_space<vmem>>, %arg3: memref<1x8x1xi32, #tpu.memory_space<vmem>>, %arg4: memref<1x1xf32, #tpu.memory_space<vmem>>, %arg5: memref<1x8x8xf32, #tpu.memory_space<vmem>>) attributes {dimension_semantics = [#tpu.dimension_semantics<parallel>], iteration_bounds = array<i64: 1>, scalar_prefetch = 0 : i64, scratch_operands = 0 : i64, tpu.core_type = #tpu.core_type<tc>, window_params = [{transform_indices = @transform_0, window_bounds = array<i64: 2, 1, 8, 32>}, {transform_indices = @transform_1, window_bounds = array<i64: 2, 1, 8, 32>}, {transform_indices = @transform_2, window_bounds = array<i64: 1, 8, 1>}, {transform_indices = @transform_3, window_bounds = array<i64: 1, 1>}, {transform_indices = @transform_4, window_bounds = array<i64: 1, 8, 8>}]} {
    %c0 = arith.constant 0 : index
    %c0_0 = arith.constant 0 : index
    %c0_1 = arith.constant 0 : index
    %c0_2 = arith.constant 0 : index
    %0 = vector.load %arg1[%c0, %c0_0, %c0_1, %c0_2] : memref<2x1x8x32xf32, #tpu.memory_space<vmem>>, vector<1x1x8x32xf32>
    %1 = vector.shape_cast %0 : vector<1x1x8x32xf32> to vector<1x8x32xf32>
    %c1 = arith.constant 1 : index
    %c0_3 = arith.constant 0 : index
    %c0_4 = arith.constant 0 : index
    %c0_5 = arith.constant 0 : index
    %2 = vector.load %arg1[%c1, %c0_3, %c0_4, %c0_5] : memref<2x1x8x32xf32, #tpu.memory_space<vmem>>, vector<1x1x8x32xf32>
    %3 = vector.shape_cast %2 : vector<1x1x8x32xf32> to vector<1x8x32xf32>
    %c0_6 = arith.constant 0 : index
    %c0_7 = arith.constant 0 : index
    %c0_8 = arith.constant 0 : index
    %c0_9 = arith.constant 0 : index
    %4 = vector.load %arg2[%c0_6, %c0_7, %c0_8, %c0_9] : memref<2x1x8x32xf32, #tpu.memory_space<vmem>>, vector<1x1x8x32xf32>
    %5 = vector.shape_cast %4 : vector<1x1x8x32xf32> to vector<1x8x32xf32>
    %c1_10 = arith.constant 1 : index
    %c0_11 = arith.constant 0 : index
    %c0_12 = arith.constant 0 : index
    %c0_13 = arith.constant 0 : index
    %6 = vector.load %arg2[%c1_10, %c0_11, %c0_12, %c0_13] : memref<2x1x8x32xf32, #tpu.memory_space<vmem>>, vector<1x1x8x32xf32>
    %7 = vector.shape_cast %6 : vector<1x1x8x32xf32> to vector<1x8x32xf32>
    %8 = arith.mulf %5, %5 : vector<1x8x32xf32>
    %cst = arith.constant dense<0.000000e+00> : vector<1x8xf32>
    %9 = vector.multi_reduction <add>, %8, %cst [2] : vector<1x8x32xf32> to vector<1x8xf32>
    %10 = vector.shape_cast %9 : vector<1x8xf32> to vector<1x8x1xf32>
    %11 = arith.mulf %1, %1 : vector<1x8x32xf32>
    %cst_14 = arith.constant dense<0.000000e+00> : vector<1x8xf32>
    %12 = vector.multi_reduction <add>, %11, %cst_14 [2] : vector<1x8x32xf32> to vector<1x8xf32>
    %13 = vector.shape_cast %12 : vector<1x8xf32> to vector<1x1x8xf32>
    "tpu.trace_start"() <{level = 10 : i32, message = "bqd,bkd->bqk"}> : () -> ()
    %cst_15 = arith.constant dense<0.000000e+00> : vector<1x8x8xf32>
    %14 = tpu.matmul %5, %1, %cst_15 {dimension_numbers = #tpu.dot_dimension_numbers<[2], [2], [1], [1], [0, 0, 0, 1, 1, 1], [0], [0]>} : vector<1x8x32xf32>, vector<1x8x32xf32>, vector<1x8x8xf32> -> vector<1x8x8xf32>
    "tpu.trace_stop"() : () -> ()
    %cst_16 = arith.constant 2.000000e+00 : f32
    %15 = vector.broadcast %cst_16 : f32 to vector<1x8x8xf32>
    %16 = arith.mulf %15, %14 : vector<1x8x8xf32>
    %17 = vector.broadcast %10 : vector<1x8x1xf32> to vector<1x8x8xf32>
    %18 = arith.subf %16, %17 : vector<1x8x8xf32>
    %19 = vector.broadcast %13 : vector<1x1x8xf32> to vector<1x8x8xf32>
    %20 = arith.subf %18, %19 : vector<1x8x8xf32>
    %c0_17 = arith.constant 0 : index
    %c0_18 = arith.constant 0 : index
    %c0_19 = arith.constant 0 : index
    %21 = vector.load %arg5[%c0_17, %c0_18, %c0_19] : memref<1x8x8xf32, #tpu.memory_space<vmem>>, vector<1x8x8xf32>
    tpu.vector_store %arg5[%c0_17, %c0_18, %c0_19], %20 {strides = array<i32>} : memref<1x8x8xf32, #tpu.memory_space<vmem>>, vector<1x8x8xf32>,
    %cst_20 = arith.constant dense<0xFF800000> : vector<1x8xf32>
    %22 = vector.multi_reduction <maximumf>, %20, %cst_20 [2] : vector<1x8x8xf32> to vector<1x8xf32>
    %23 = vector.shape_cast %22 : vector<1x8xf32> to vector<1x8x1xf32>
    %24 = vector.broadcast %23 : vector<1x8x1xf32> to vector<1x8x8xf32>
    %25 = arith.subf %20, %24 : vector<1x8x8xf32>
    %26 = math.exp %25 : vector<1x8x8xf32>
    %cst_21 = arith.constant dense<0.000000e+00> : vector<1x8xf32>
    %27 = vector.multi_reduction <add>, %26, %cst_21 [2] : vector<1x8x8xf32> to vector<1x8xf32>
    %28 = vector.shape_cast %27 : vector<1x8xf32> to vector<1x8x1xf32>
    %29 = math.log %28 : vector<1x8x1xf32>
    %30 = arith.addf %23, %29 : vector<1x8x1xf32>
    %31 = tpu.iota {dimensions = array<i32: 2>} : vector<1x8x8xi32>
    %c0_22 = arith.constant 0 : index
    %c0_23 = arith.constant 0 : index
    %c0_24 = arith.constant 0 : index
    %32 = vector.load %arg3[%c0_22, %c0_23, %c0_24] : memref<1x8x1xi32, #tpu.memory_space<vmem>>, vector<1x8x1xi32>
    %33 = vector.broadcast %32 : vector<1x8x1xi32> to vector<1x8x8xi32>
    %34 = arith.cmpi eq, %31, %33 : vector<1x8x8xi32>
    %35 = arith.extui %34 : vector<1x8x8xi1> to vector<1x8x8xi32>
    %36 = arith.sitofp %35 : vector<1x8x8xi32> to vector<1x8x8xf32>
    %37 = arith.mulf %20, %36 : vector<1x8x8xf32>
    %cst_25 = arith.constant dense<0.000000e+00> : vector<1x8xf32>
    %38 = vector.multi_reduction <add>, %37, %cst_25 [2] : vector<1x8x8xf32> to vector<1x8xf32>
    %39 = vector.shape_cast %38 : vector<1x8xf32> to vector<1x8x1xf32>
    %40 = arith.subf %30, %39 : vector<1x8x1xf32>
    %cst_26 = arith.constant dense<0.000000e+00> : vector<1x1xf32>
    %41 = vector.multi_reduction <add>, %40, %cst_26 [1] : vector<1x8x1xf32> to vector<1x1xf32>
    %cst_27 = arith.constant 1.250000e-01 : f32
    %42 = vector.broadcast %cst_27 : f32 to vector<1x1xf32>
    %43 = arith.mulf %41, %42 : vector<1x1xf32>
    %cst_28 = arith.constant 1.000000e+00 : f32
    %44 = vector.broadcast %cst_28 : f32 to vector<1x8x32xf32>
    %45 = arith.addf %44, %3 : vector<1x8x32xf32>
    %46 = arith.mulf %1, %1 : vector<1x8x32xf32>
    %47 = arith.subf %45, %46 : vector<1x8x32xf32>
    %48 = math.exp %3 : vector<1x8x32xf32>
    %49 = arith.subf %47, %48 : vector<1x8x32xf32>
    %cst_29 = arith.constant dense<0.000000e+00> : vector<1x8xf32>
    %50 = vector.multi_reduction <add>, %49, %cst_29 [2] : vector<1x8x32xf32> to vector<1x8xf32>
    %51 = vector.shape_cast %50 : vector<1x8xf32> to vector<1x8x1xf32>
    %cst_30 = arith.constant dense<0.000000e+00> : vector<1x1xf32>
    %52 = vector.multi_reduction <add>, %51, %cst_30 [1] : vector<1x8x1xf32> to vector<1x1xf32>
    %cst_31 = arith.constant 1.250000e-01 : f32
    %53 = vector.broadcast %cst_31 : f32 to vector<1x1xf32>
    %54 = arith.mulf %52, %53 : vector<1x1xf32>
    %cst_32 = arith.constant 1.000000e+00 : f32
    %55 = vector.broadcast %cst_32 : f32 to vector<1x8x32xf32>
    %56 = arith.addf %55, %7 : vector<1x8x32xf32>
    %57 = arith.mulf %5, %5 : vector<1x8x32xf32>
    %58 = arith.subf %56, %57 : vector<1x8x32xf32>
    %59 = math.exp %7 : vector<1x8x32xf32>
    %60 = arith.subf %58, %59 : vector<1x8x32xf32>
    %cst_33 = arith.constant dense<0.000000e+00> : vector<1x8xf32>
    %61 = vector.multi_reduction <add>, %60, %cst_33 [2] : vector<1x8x32xf32> to vector<1x8xf32>
    %62 = vector.shape_cast %61 : vector<1x8xf32> to vector<1x8x1xf32>
    %cst_34 = arith.constant dense<0.000000e+00> : vector<1x1xf32>
    %63 = vector.multi_reduction <add>, %62, %cst_34 [1] : vector<1x8x1xf32> to vector<1x1xf32>
    %cst_35 = arith.constant 1.250000e-01 : f32
    %64 = vector.broadcast %cst_35 : f32 to vector<1x1xf32>
    %65 = arith.mulf %63, %64 : vector<1x1xf32>
    %66 = arith.addf %54, %65 : vector<1x1xf32>
    %cst_36 = arith.constant -5.000000e-01 : f32
    %67 = vector.broadcast %cst_36 : f32 to vector<1x1xf32>
    %68 = arith.mulf %67, %66 : vector<1x1xf32>
    %cst_37 = arith.constant 1.000000e-01 : f32
    %69 = vector.broadcast %cst_37 : f32 to vector<1x1xf32>
    %70 = arith.mulf %69, %68 : vector<1x1xf32>
    %71 = arith.addf %70, %43 : vector<1x1xf32>
    %c0_38 = arith.constant 0 : index
    %c0_39 = arith.constant 0 : index
    %72 = vector.load %arg4[%c0_38, %c0_39] : memref<1x1xf32, #tpu.memory_space<vmem>>, vector<1x1xf32>
    tpu.vector_store %arg4[%c0_38, %c0_39], %71 {strides = array<i32>} : memref<1x1xf32, #tpu.memory_space<vmem>>, vector<1x1xf32>,
    return
  }
  func.func @transform_0(%arg0: i32) -> (i32, i32, i32, i32) {
    %c0_i32 = arith.constant 0 : i32
    %c0_i32_0 = arith.constant 0 : i32
    %c0_i32_1 = arith.constant 0 : i32
    %c0_i32_2 = arith.constant 0 : i32
    return %c0_i32, %arg0, %c0_i32_0, %c0_i32_1 : i32, i32, i32, i32
  }
  func.func @transform_1(%arg0: i32) -> (i32, i32, i32, i32) {
    %c0_i32 = arith.constant 0 : i32
    %c0_i32_0 = arith.constant 0 : i32
    %c0_i32_1 = arith.constant 0 : i32
    %c0_i32_2 = arith.constant 0 : i32
    return %c0_i32, %arg0, %c0_i32_0, %c0_i32_1 : i32, i32, i32, i32
  }
  func.func @transform_2(%arg0: i32) -> (i32, i32, i32) {
    %c0_i32 = arith.constant 0 : i32
    %c0_i32_0 = arith.constant 0 : i32
    %c0_i32_1 = arith.constant 0 : i32
    return %arg0, %c0_i32, %c0_i32_0 : i32, i32, i32
  }
  func.func @transform_3(%arg0: i32) -> (i32, i32) {
    %c0_i32 = arith.constant 0 : i32
    %c0_i32_0 = arith.constant 0 : i32
    return %arg0, %c0_i32 : i32, i32
  }
  func.func @transform_4(%arg0: i32) -> (i32, i32, i32) {
    %c0_i32 = arith.constant 0 : i32
    %c0_i32_0 = arith.constant 0 : i32
    %c0_i32_1 = arith.constant 0 : i32
    return %arg0, %c0_i32, %c0_i32_0 : i32, i32, i32
  }
}

</mosaic_0001>

<llo_original>
// kernel: tpu_custom_call.1
$region0: #{tpu_custom_call.1}
  #allocation0 [shape = 'u32[]', space=smem, size = 0x4, offset = 0x4, fixed_abs, tag = 'smem constant byte address 0x4 - core index']
  #allocation1 [shape = 'u32[144,128]{1,0:T(1,128)}', space=vmem, size = 0x12000, scoped, tag = 'internal scratch']
  %s0 = inlined_call_operand.hbm [shape: f32[2,1,8,32], index: 0, kind: input, shape index: {}]
  %s1 = inlined_call_operand.hbm [shape: f32[2,1,8,32], index: 1, kind: input, shape index: {}]
  %s2 = inlined_call_operand.vmem [shape: s32[1,8,1], index: 2, kind: input, shape index: {}]
  %s3 = inlined_call_operand.hbm [shape: f32[1,1], index: 3, kind: output, shape index: {0}]
  %s4 = inlined_call_operand.hbm [shape: f32[1,8,8], index: 4, kind: output, shape index: {1}]
  %5 = xla_tuple %s3, %s4
  %s6 = sld [smem:[#allocation0]]
  $region38: #{tpu_custom_call.1} parent=0
    _
  %s8 = ssub.s32 1, %s6
  %s9 = scalar_select 0, %s8, %s6
  $region1: #{tpu_custom_call.1} parent=0
    #allocation2 [shape = 'u8[8192]{0}', space=vmem, size = 0x2000, scoped, tag = 'input window, operand 0, single buffered']
    #allocation3 [shape = 's32[1]{0}', space=sflag, size = 0x4, scoped, tag = 'scoped memory for tpu_custom_call.1']
    #allocation4 [shape = 's32[1]{0}', space=sflag, size = 0x4, scoped, tag = 'scoped memory for tpu_custom_call.1']
    #allocation5 [shape = 'u8[8192]{0}', space=vmem, size = 0x2000, scoped, tag = 'input window, operand 1, single buffered']
    #allocation6 [shape = 's32[1]{0}', space=sflag, size = 0x4, scoped, tag = 'scoped memory for tpu_custom_call.1']
    #allocation7 [shape = 'u8[512]{0}', space=vmem, size = 0x400, scoped, tag = 'output window, operand 0, single buffered']
    #allocation8 [shape = 'u8[4096]{0}', space=vmem, size = 0x1000, scoped, tag = 'output window, operand 1, single buffered']
    #allocation9 [shape = 's32[1]{0}', space=sflag, size = 0x4, scoped, tag = 'scoped memory for tpu_custom_call.1']
    %10 = vsyncpa [#allocation3], 0
    %11 = vsyncpa [#allocation6], 0
    %12 = vsyncpa [#allocation4], 0
    %13 = vsyncpa [#allocation9], 0
    // Predicated region
    $region2: #{tpu_custom_call.1} parent=1 // pred_check
      _
    $region3: #{tpu_custom_call.1} parent=1 // pred_check_branch
      %15 = sbr.rel (0) target = $region5
    $region4: #{tpu_custom_call.1} parent=1 // pred_region
      %s17 = ssub.s32 256, 256
      %18 = vsyncadd [#allocation3], %s17
      %s19 = sshll.u32 [#allocation2], 4
      %s20 = int_to_ptr.vmem [resolvable:$true] %s19
      %25 = dma.hbm_to_vmem [thread:$0]  %s0, 256, %s20, [#allocation3], 128, 128, 8
    $region5: #{tpu_custom_call.1} parent=1 // pred_fallthru
      _
    // Predicated region
    $region6: #{tpu_custom_call.1} parent=1 // pred_check
      _
    $region7: #{tpu_custom_call.1} parent=1 // pred_check_branch
      %27 = sbr.rel (0) target = $region9
    $region8: #{tpu_custom_call.1} parent=1 // pred_region
      %s29 = ssub.s32 256, 256
      %30 = vsyncadd [#allocation6], %s29
      %s31 = sshll.u32 [#allocation5], 4
      %s32 = int_to_ptr.vmem [resolvable:$true] %s31
      %37 = dma.hbm_to_vmem [thread:$0]  %s1, 256, %s32, [#allocation6], 128, 128, 8
    $region9: #{tpu_custom_call.1} parent=1 // pred_fallthru
      _
    // Predicated region
    $region10: #{tpu_custom_call.1} parent=1 // pred_check
      _
    $region11: #{tpu_custom_call.1} parent=1 // pred_check_branch
      %39 = sbr.rel (0) target = $region13
    $region12: #{tpu_custom_call.1} parent=1 // pred_region
      _
    $region13: #{tpu_custom_call.1} parent=1 // pred_fallthru
      _
    // Predicated region
    $region14: #{tpu_custom_call.1} parent=1 // pred_check
      _
    $region15: #{tpu_custom_call.1} parent=1 // pred_check_branch
      %41 = sbr.rel (0) target = $region17
    $region16: #{tpu_custom_call.1} parent=1 // pred_region
      %42 = dma.done [#allocation3], 256
    $region17: #{tpu_custom_call.1} parent=1 // pred_fallthru
      _
    // Predicated region
    $region18: #{tpu_custom_call.1} parent=1 // pred_check
      _
    $region19: #{tpu_custom_call.1} parent=1 // pred_check_branch
      %44 = sbr.rel (0) target = $region21
    $region20: #{tpu_custom_call.1} parent=1 // pred_region
      %45 = dma.done [#allocation6], 256
    $region21: #{tpu_custom_call.1} parent=1 // pred_fallthru
      _
    %v46 = vld [vmem:[#allocation2] sm:$0xff]
    %s47 = scalar_lea.vmem [#allocation2], 8
    %v48 = vld [vmem:[%s47] sm:$0xff]
    %v49 = vld [vmem:[#allocation5] sm:$0xff]
    %s50 = scalar_lea.vmem [#allocation5], 8
    %v51 = vld [vmem:[%s50] sm:$0xff]
    %v52 = vmul.f32 %v49, %v49
    %vm53 = vcmask 261120
    %v54 = vsel %vm53, %v52, 0.0
    %55 = vadd.xlane.f32.xlu0 %v54
    %v56 = vpop.xlane.xlu0 %55
    %v57 = vmul.f32 %v46, %v46
    %v58 = vsel %vm53, %v57, 0.0
    %59 = vadd.xlane.f32.xlu0 %v58
    %v60 = vpop.xlane.xlu0 %59
    %v62 = vsel %vm53, %v49, 0
    %v65 = vsel %vm53, %v46, 0
    %67 = vmatprep.subr.mxu0 0.0
    %68 = vmatpush1.xpose.msra.mxu0 %v65
    %69 = vmatprep.subr.mxu0 0.0
    %70 = vmatpush1.xpose.msra.mxu0 0.0
    %71 = vmatprep.subr.mxu0 0.0
    %72 = vmatpush1.xpose.msra.mxu0 0.0
    %73 = vmatprep.subr.mxu0 0.0
    %74 = vmatpush1.xpose.msra.mxu0 0.0
    %75 = vmatprep.subr.mxu0 0.0
    %76 = vmatpush1.xpose.msra.mxu0 0.0
    %77 = vmatprep.subr.mxu0 0.0
    %78 = vmatpush1.xpose.msra.mxu0 0.0
    %79 = vmatprep.subr.mxu0 0.0
    %80 = vmatpush1.xpose.msra.mxu0 0.0
    %81 = vmatprep.subr.mxu0 0.0
    %82 = vmatpush1.xpose.msra.mxu0 0.0
    %83 = vmatprep.subr.mxu0 0.0
    %84 = vmatpush1.xpose.msra.mxu0 0.0
    %85 = vmatprep.subr.mxu0 0.0
    %86 = vmatpush1.xpose.msra.mxu0 0.0
    %87 = vmatprep.subr.mxu0 0.0
    %88 = vmatpush1.xpose.msra.mxu0 0.0
    %89 = vmatprep.subr.mxu0 0.0
    %90 = vmatpush1.xpose.msra.mxu0 0.0
    %91 = vmatprep.subr.mxu0 0.0
    %92 = vmatpush1.xpose.msra.mxu0 0.0
    %93 = vmatprep.subr.mxu0 0.0
    %94 = vmatpush1.xpose.msra.mxu0 0.0
    %95 = vmatprep.subr.mxu0 0.0
    %96 = vmatpush1.xpose.msra.mxu0 0.0
    %97 = vmatprep.subr.mxu0 0.0
    %98 = vmatpush1.xpose.msra.mxu0 0.0
    %99 = vmatprep.subr.mxu0 0.0
    %100 = vmatpush1.xpose.msra.mxu0 0.0
    %101 = vmatprep.subr.mxu0 0.0
    %102 = vmatpush1.xpose.msra.mxu0 0.0
    %103 = vmatprep.subr.mxu0 0.0
    %104 = vmatpush1.xpose.msra.mxu0 0.0
    %105 = vmatprep.subr.mxu0 0.0
    %106 = vmatpush1.xpose.msra.mxu0 0.0
    %107 = vmatprep.subr.mxu0 0.0
    %108 = vmatpush1.xpose.msra.mxu0 0.0
    %109 = vmatprep.subr.mxu0 0.0
    %110 = vmatpush1.xpose.msra.mxu0 0.0
    %111 = vmatprep.subr.mxu0 0.0
    %112 = vmatpush1.xpose.msra.mxu0 0.0
    %113 = vmatprep.subr.mxu0 0.0
    %114 = vmatpush1.xpose.msra.mxu0 0.0
    %115 = vmatprep.subr.mxu0 0.0
    %116 = vmatpush1.xpose.msra.mxu0 0.0
    %117 = vmatprep.subr.mxu0 0.0
    %118 = vmatpush1.xpose.msra.mxu0 0.0
    %119 = vmatprep.subr.mxu0 0.0
    %120 = vmatpush1.xpose.msra.mxu0 0.0
    %121 = vmatprep.subr.mxu0 0.0
    %122 = vmatpush1.xpose.msra.mxu0 0.0
    %123 = vmatprep.subr.mxu0 0.0
    %124 = vmatpush1.xpose.msra.mxu0 0.0
    %125 = vmatprep.subr.mxu0 0.0
    %126 = vmatpush1.xpose.msra.mxu0 0.0
    %127 = vmatprep.subr.mxu0 0.0
    %128 = vmatpush1.xpose.msra.mxu0 0.0
    %129 = vmatprep.subr.mxu0 0.0
    %130 = vmatpush1.xpose.msra.mxu0 0.0
    %131 = vmatprep.mubr.f32.mxu0 0.0
    %132 = vmatmul.mubr.f32.gmra.mrb[0].mxu0 %v62
    %v133 = vpop.f32.mrb[0].mxu0
    %v134 = vadd.f32 0.0, %v133
    %v135 = vpop.f32.mrb[0].mxu0
    %136 = vdwg.mxu0
    %v137 = vmul.f32 %v134, 2.0
    %v138 = vsub.f32 %v137, %v56
    %v140 = vlaneseq
    %v141 = vand.u32 %v140, 127
    %v142 = vlaneseq
    %v143 = vshrl.u32 %v142, 7
    %v144 = vsub.s32 %v141, %v143
    %v145 = vrot.slane %v60, %v144
    %vm146 = vcmask 1042434
    %v147 = vsel %vm146, %v145, %v145
    %vm148 = vcmask 1043459
    %v149 = vsel %vm148, %v145, %v147
    %vm150 = vcmask 1044484
    %v151 = vsel %vm150, %v145, %v149
    %vm152 = vcmask 1045509
    %v153 = vsel %vm152, %v145, %v151
    %vm154 = vcmask 1046534
    %v155 = vsel %vm154, %v145, %v153
    %vm156 = vcmask 1047559
    %v157 = vsel %vm156, %v145, %v155
    %v159 = vsub.f32 %v138, %v157
    %vm160 = vcmask 64512
    %161 = vst.msk [vmem:[#allocation8] sm:$0xff] %vm160, %v159
    %v162 = vsel %vm160, %v159, -inf
    %163 = vmax.xlane.f32.xlu0 %v162
    %v164 = vpop.xlane.xlu0 %163
    %v165 = vsub.f32 %v159, %v164
    %v166 = vmul.f32 %v165, 1.442695
    %v167 = vpow.pop %v166
    %v168 = vsel %vm160, %v167, 0.0
    %169 = vadd.xlane.f32.xlu0 %v168
    %v170 = vpop.xlane.xlu0 %169
    %v171 = vlog2.pop %v170
    %v172 = vmul.f32 %v171, 0.6931472
    %v173 = vadd.f32 %v164, %v172
    %v174 = vld [vmem:[%s2] sm:$0xff]
    %175 = vset.pattern.permute.xlu0 0
    %176 = vperm.xlu0 %175, %v174
    %v177 = vpop.permute.xlu0 %176
    %vm178 = vcmp.eq.s32.totalorder %v141, %v177
    %v179 = vsel %vm178, 1, 0
    %v180 = vcvt.s32.f32 %v179
    %v181 = vmul.f32 %v159, %v180
    %v182 = vsel %vm160, %v181, 0.0
    %183 = vadd.xlane.f32.xlu0 %v182
    %v184 = vpop.xlane.xlu0 %183
    %v185 = vsub.f32 %v173, %v184
    %v186 = vrot.slane %v185, 4
    %v187 = vadd.f32 %v185, %v186
    %v188 = vrot.slane %v187, 2
    %v189 = vadd.f32 %v187, %v188
    %v190 = vrot.slane %v189, 1
    %v191 = vadd.f32 %v189, %v190
    %v192 = vmul.f32 %v191, 0.125
    %v193 = vadd.f32 %v48, 1.0
    %v194 = vsub.f32 %v193, %v57
    %v195 = vmul.f32 %v48, 1.442695
    %v196 = vpow.pop %v195
    %v197 = vsub.f32 %v194, %v196
    %v198 = vsel %vm53, %v197, 0.0
    %199 = vadd.xlane.f32.xlu0 %v198
    %v200 = vpop.xlane.xlu0 %199
    %v201 = vrot.slane %v200, 4
    %v202 = vadd.f32 %v200, %v201
    %v203 = vrot.slane %v202, 2
    %v204 = vadd.f32 %v202, %v203
    %v205 = vrot.slane %v204, 1
    %v206 = vadd.f32 %v204, %v205
    %v207 = vmul.f32 %v206, 0.125
    %v208 = vadd.f32 %v51, 1.0
    %v209 = vsub.f32 %v208, %v52
    %v210 = vmul.f32 %v51, 1.442695
    %v211 = vpow.pop %v210
    %v212 = vsub.f32 %v209, %v211
    %v213 = vsel %vm53, %v212, 0.0
    %214 = vadd.xlane.f32.xlu0 %v213
    %v215 = vpop.xlane.xlu0 %214
    %v216 = vrot.slane %v215, 4
    %v217 = vadd.f32 %v215, %v216
    %v218 = vrot.slane %v217, 2
    %v219 = vadd.f32 %v217, %v218
    %v220 = vrot.slane %v219, 1
    %v221 = vadd.f32 %v219, %v220
    %v222 = vmul.f32 %v221, 0.125
    %v223 = vadd.f32 %v207, %v222
    %v224 = vmul.f32 %v223, -0.5
    %v225 = vmul.f32 %v224, 0.1
    %v226 = vadd.f32 %v225, %v192
    %vm227 = vcmask 0
    %228 = vst.msk [vmem:[#allocation7] sm:$0x1] %vm227, %v226
    // Predicated region
    $region22: #{tpu_custom_call.1} parent=1 // pred_check
      _
    $region23: #{tpu_custom_call.1} parent=1 // pred_check_branch
      %230 = sbr.rel (0) target = $region25
    $region24: #{tpu_custom_call.1} parent=1 // pred_region
      %s232 = ssub.s32 16, 16
      %233 = vsyncadd [#allocation4], %s232
      %s235 = sshll.u32 [#allocation7], 4
      %s236 = int_to_ptr.vmem [resolvable:$true] %s235
      %238 = dma.vmem_to_hbm [thread:$0]  %s236, 16, %s3, [#allocation4]
    $region25: #{tpu_custom_call.1} parent=1 // pred_fallthru
      _
    // Predicated region
    $region26: #{tpu_custom_call.1} parent=1 // pred_check
      _
    $region27: #{tpu_custom_call.1} parent=1 // pred_check_branch
      %240 = sbr.rel (0) target = $region29
    $region28: #{tpu_custom_call.1} parent=1 // pred_region
      %s242 = ssub.s32 128, 128
      %243 = vsyncadd [#allocation9], %s242
      %s245 = sshll.u32 [#allocation8], 4
      %s246 = int_to_ptr.vmem [resolvable:$true] %s245
      %248 = dma.vmem_to_hbm [thread:$0]  %s246, 128, %s4, [#allocation9]
    $region29: #{tpu_custom_call.1} parent=1 // pred_fallthru
      _
    // Predicated region
    $region30: #{tpu_custom_call.1} parent=1 // pred_check
      _
    $region31: #{tpu_custom_call.1} parent=1 // pred_check_branch
      %250 = sbr.rel (0) target = $region33
    $region32: #{tpu_custom_call.1} parent=1 // pred_region
      %251 = dma.done [#allocation4], 16
    $region33: #{tpu_custom_call.1} parent=1 // pred_fallthru
      _
    // Predicated region
    $region34: #{tpu_custom_call.1} parent=1 // pred_check
      _
    $region35: #{tpu_custom_call.1} parent=1 // pred_check_branch
      %253 = sbr.rel (0) target = $region37
    $region36: #{tpu_custom_call.1} parent=1 // pred_region
      %254 = dma.done [#allocation9], 128
    $region37: #{tpu_custom_call.1} parent=1 // pred_fallthru
      _
    %255 = vsyncpa [#allocation3], 1
    %256 = vsyncpa [#allocation6], 1
    %257 = vsyncpa [#allocation4], 1
    %258 = vsyncpa [#allocation9], 1

</llo_original>
